<compile_context>
chip_gen: v6e
topology: v6e:2x2x1
jax: 0.10.0
libtpu: 0.0.40
codegen_flags: <defaults>
</compile_context>

<pallas_src>
import functools

import jax
import jax.numpy as jnp
from jax.experimental import pallas as pl
from jax.experimental.pallas import tpu as pltpu

COMPUTE_DTYPE = jnp.bfloat16   # MXU operand + intermediate streaming dtype
OUT_DTYPE = jnp.bfloat16       # kernel output dtype (wrapper casts back to f32)


def _round_up(v, m):
    return (v + m - 1) // m * m


def _device_kind():
    try:
        return jax.devices()[0].device_kind.lower()
    except Exception:
        return ""


def group_mfm_kernel(x_ref, w1_ref, b1_ref, w2_ref, b2_ref, o_ref,
                     ybuf_ref, zbuf_ref, *,
                     cin, cout, kh, kw, stride, h, w, pad, wp, r_rows, s_out,
                     epi_dtype):
    """Fused `group` forward for one image (channels-first, flat padded spatial).

    x_ref   : (1, Cin, Sext)        bf16  zero-padded + tail-margin input
    w1_ref  : (2*Cin, Cin)          bf16  1x1 conv_a weights, a|b halves stacked on rows
    b1_ref  : (2*Cin, 1)            f32
    w2_ref  : (2*Cout, kh*kw*Cin)   bf16  kxk conv weights, taps flattened into K
    b2_ref  : (2*Cout, 1)           f32
    o_ref   : (1, Cout, S_out)      bf16  MFM conv output; row r <-> stride-1 row r*stride
    ybuf_ref: VMEM (Cin, Sext)            conv_a MFM output
    zbuf_ref: VMEM (kh*kw*Cin, S_out)     stacked shifted copies of ybuf (big-K GEMM RHS)
    """
    x = x_ref[0]                                                   # (Cin, Sext)
    sext = x.shape[-1]

    # ---- conv_a: 1x1 MFM, one fused GEMM for both halves --------------------
    y = jnp.dot(w1_ref[...], x, preferred_element_type=jnp.float32) + b1_ref[...]
    y = y.astype(epi_dtype)
    y = jnp.maximum(y[:cin, :], y[cin:, :])                        # (Cin, Sext)

    # In-kernel pad-ring mask (the second conv's padding pads conv_a's OUTPUT with
    # zeros, not max(bias_a, bias_b)).  Built from a lane iota; the row index is
    # recovered with an exact-enough f32 divide (no vector integer division needed).
    f = jax.lax.broadcasted_iota(jnp.int32, (1, sext), 1)
    row = ((f.astype(jnp.float32) + 0.5) * (1.0 / wp)).astype(jnp.int32)
    col = f - row * wp
    valid = (row >= pad) & (row < pad + h) & (col >= pad) & (col < pad + w)
    y = jnp.where(valid, y, jnp.zeros((), epi_dtype))
    ybuf_ref[...] = y.astype(ybuf_ref.dtype)

    # ---- build the stacked-K RHS: Z[t*Cin+c, r*Wp+j] = ybuf[c, (r*s+di)*Wp+dj+j] ----
    for t in range(kh * kw):                                       # static unroll
        di, dj = divmod(t, kw)
        rows = slice(t * cin, (t + 1) * cin)
        if stride == 1:
            # contiguous output rows -> one slab copy per tap
            zbuf_ref[rows, :] = ybuf_ref[:, pl.ds(di * wp + dj, s_out)]
        else:
            # stride-aware: copy only the Ho needed rows (row subsampling in-kernel)
            for r in range(r_rows):
                zbuf_ref[rows, r * wp:(r + 1) * wp] = (
                    ybuf_ref[:, pl.ds((r * stride + di) * wp + dj, wp)])
            if s_out > r_rows * wp:                 # zero the lane-padding tail
                zbuf_ref[rows, r_rows * wp:] = jnp.zeros(
                    (cin, s_out - r_rows * wp), ybuf_ref.dtype)

    # ---- conv: kxk MFM as ONE big-K GEMM (K = kh*kw*Cin), f32 accumulation ---
    acc = jnp.dot(w2_ref[...], zbuf_ref[...], preferred_element_type=jnp.float32)
    acc = (acc + b2_ref[...]).astype(epi_dtype)                    # (2Cout, S_out)
    o_ref[0] = jnp.maximum(acc[:cout, :], acc[cout:, :]).astype(o_ref.dtype)


@functools.partial(jax.jit, static_argnames=("kernel_size", "stride", "padding"))
def group_forward(x_nchw, params, kernel_size, stride, padding):
    N, Cin, H, W = x_nchw.shape
    kh = kw = kernel_size
    p, s = padding, stride
    Cout = params["w2"].shape[0] // 2
    Hp, Wp = H + 2 * p, W + 2 * p
    S = Hp * Wp
    Ho = (Hp - kh) // s + 1
    Wo = (Wp - kw) // s + 1

    R = Ho                               # output rows computed in-kernel (stride-aware)
    S_out = _round_up(R * Wp, 128)       # lane-dense width -> unmasked full-lane stores
    # ybuf extent: every tap slice (slab for s==1, per-row for s>1) stays in-bounds.
    need = max((kh - 1) * Wp + (kw - 1) + S_out,
               ((R - 1) * s + kh) * Wp + (kw - 1),
               S)
    Sext = _round_up(need, 128)

    # Activations: NCHW -> zero-pad spatial -> flatten -> zero tail (tiny XLA pad,
    # NOT an im2col blowup); bf16 halves HBM read traffic for the kernel.
    xp = jnp.pad(x_nchw, ((0, 0), (0, 0), (p, p), (p, p))).reshape(N, Cin, S)
    xp = jnp.pad(xp, ((0, 0), (0, 0), (0, Sext - S))).astype(COMPUTE_DTYPE)

    # Weights: a|b halves stacked on rows; kxk taps flattened into the GEMM K dim so
    # W2f[o, (di*kw+dj)*Cin + c] == w2[o, c, di, dj]  (matches the Z row layout).
    w1 = params["w1"].reshape(2 * Cin, Cin).astype(COMPUTE_DTYPE)
    b1 = params["b1"].reshape(2 * Cin, 1).astype(jnp.float32)
    w2f = params["w2"].transpose(0, 2, 3, 1).reshape(2 * Cout, kh * kw * Cin)
    w2f = w2f.astype(COMPUTE_DTYPE)
    b2 = params["b2"].reshape(2 * Cout, 1).astype(jnp.float32)

    # Per-generation choices: bf16 MFM epilogue on bf16-VALU gens (v6e/v7x), f32 on
    # v5e and unknown gens; VMEM budget derived from actual block/scratch sizes.
    kind = _device_kind()
    is_v7 = ("v7" in kind) or ("7x" in kind)
    epi_dtype = jnp.bfloat16 if (("v6" in kind) or is_v7) else jnp.float32
    blk_bytes = 2 * (Cin * Sext + Cout * S_out) * 2            # double-buffered in/out
    wt_bytes = (2 * Cin * Cin + 2 * Cout * kh * kw * Cin) * 2 + (2 * Cin + 2 * Cout) * 4
    scratch_bytes = (Cin * Sext + kh * kw * Cin * S_out) * 2
    need_vmem = blk_bytes + 2 * wt_bytes + scratch_bytes
    vmem_cap = (48 << 20) if is_v7 else (96 << 20)
    vmem_limit = int(min(vmem_cap, max(2 * need_vmem, 16 << 20)))

    kernel = functools.partial(
        group_mfm_kernel, cin=Cin, cout=Cout, kh=kh, kw=kw, stride=s,
        h=H, w=W, pad=p, wp=Wp, r_rows=R, s_out=S_out, epi_dtype=epi_dtype)

    out_flat = pl.pallas_call(
        kernel,
        out_shape=jax.ShapeDtypeStruct((N, Cout, S_out), OUT_DTYPE),
        grid_spec=pltpu.PrefetchScalarGridSpec(
            num_scalar_prefetch=0,
            grid=(N,),
            in_specs=[
                pl.BlockSpec((1, Cin, Sext), lambda n: (n, 0, 0)),
                pl.BlockSpec((2 * Cin, Cin), lambda n: (0, 0)),
                pl.BlockSpec((2 * Cin, 1), lambda n: (0, 0)),
                pl.BlockSpec((2 * Cout, kh * kw * Cin), lambda n: (0, 0)),
                pl.BlockSpec((2 * Cout, 1), lambda n: (0, 0)),
            ],
            out_specs=pl.BlockSpec((1, Cout, S_out), lambda n: (n, 0, 0)),
            scratch_shapes=[
                pltpu.VMEM((Cin, Sext), COMPUTE_DTYPE),
                pltpu.VMEM((kh * kw * Cin, S_out), COMPUTE_DTYPE),
            ],
        ),
        compiler_params=pltpu.CompilerParams(
            dimension_semantics=("parallel",),       # megacore splits the batch
            vmem_limit_bytes=vmem_limit),
    )(xp, w1, b1, w2f, b2)

    # Kernel row r already corresponds to stride-1 row r*s, so only columns need
    # subsampling; crop the right-edge junk columns and the lane padding (bf16 ops).
    out = out_flat[:, :, :R * Wp].reshape(N, Cout, R, Wp)
    out = out[:, :, :, ::s][:, :, :, :Wo]
    # TODO(synk): add a spatial grid axis (row tiles + (kh-1)-row halo) so very large
    # images bound VMEM/vreg pressure and v7x's two TensorCores get work when N <= 2.
    return out.astype(jnp.float32)   # module-facing dtype; values carry bf16 rounding


def init_group_params(key, in_channels, out_channels, kernel_size):
    """Mirror PyTorch Conv2d default init: U(-1/sqrt(fan_in), 1/sqrt(fan_in))."""
    k1, k2, k3, k4 = jax.random.split(key, 4)
    fan1 = in_channels
    w1 = jax.random.uniform(k1, (2 * in_channels, in_channels, 1, 1),
                            jnp.float32, -1.0, 1.0) / jnp.sqrt(fan1)
    b1 = jax.random.uniform(k2, (2 * in_channels,), jnp.float32, -1.0, 1.0) / jnp.sqrt(fan1)
    fan2 = in_channels * kernel_size * kernel_size
    w2 = jax.random.uniform(k3, (2 * out_channels, in_channels, kernel_size, kernel_size),
                            jnp.float32, -1.0, 1.0) / jnp.sqrt(fan2)
    b2 = jax.random.uniform(k4, (2 * out_channels,), jnp.float32, -1.0, 1.0) / jnp.sqrt(fan2)
    return dict(w1=w1, b1=b1, w2=w2, b2=b2)


def group_reference(x, params, kernel_size, stride, padding):
    """Pure-JAX (XLA conv) reference of the PyTorch module, f32."""
    def mfm_conv(x, w, b, s, p):
        y = jax.lax.conv_general_dilated(
            x, w, window_strides=(s, s), padding=((p, p), (p, p)),
            dimension_numbers=("NCHW", "OIHW", "NCHW"))
        y = y + b.reshape(1, -1, 1, 1)
        c = y.shape[1] // 2
        return jnp.maximum(y[:, :c], y[:, c:])

    y = mfm_conv(x, params["w1"], params["b1"], 1, 0)
    return mfm_conv(y, params["w2"], params["b2"], stride, padding)


if __name__ == "__main__":
    key = jax.random.PRNGKey(0)
    k_x, k_p = jax.random.split(key)

    N, C_in, H, W = 2, 4, 16, 16
    C_out, ksize, stride, pad = 8, 3, 1, 1

    x = jax.random.normal(k_x, (N, C_in, H, W), jnp.float32)
    params = init_group_params(k_p, C_in, C_out, ksize)

    out = group_forward(x, params, ksize, stride, pad)
    out = jax.block_until_ready(out)
    assert out.shape == (N, C_out, H, W), out.shape

    # Correctness check against the XLA reference (bf16 MXU operands, bf16
    # intermediate/output -> loose tolerance).
    ref = group_reference(x, params, ksize, stride, pad)
    err = float(jnp.max(jnp.abs(out - ref)))
    assert err < 1e-1, f"max abs error vs reference: {err}"
    print("KERNEL_OK")
</pallas_src>

<mosaic_0001>
module attributes {stable_mosaic.version = 11 : i64} {
  func.func @group_mfm_kernel(%arg0: i32, %arg1: memref<1x4x512xbf16, #tpu.memory_space<vmem>>, %arg2: memref<8x4xbf16, #tpu.memory_space<vmem>>, %arg3: memref<8x1xf32, #tpu.memory_space<vmem>>, %arg4: memref<16x36xbf16, #tpu.memory_space<vmem>>, %arg5: memref<16x1xf32, #tpu.memory_space<vmem>>, %arg6: memref<1x8x384xbf16, #tpu.memory_space<vmem>>, %arg7: memref<4x512xbf16, #tpu.memory_space<vmem>>, %arg8: memref<36x384xbf16, #tpu.memory_space<vmem>>) attributes {dimension_semantics = [#tpu.dimension_semantics<parallel>], iteration_bounds = array<i64: 2>, scalar_prefetch = 0 : i64, scratch_operands = 2 : i64, tpu.core_type = #tpu.core_type<tc>, window_params = [{transform_indices = @transform_0, window_bounds = array<i64: 1, 4, 512>}, {pipeline_mode = #tpu.pipeline_mode<synchronous>, transform_indices = @transform_1, window_bounds = array<i64: 8, 4>}, {pipeline_mode = #tpu.pipeline_mode<synchronous>, transform_indices = @transform_2, window_bounds = array<i64: 8, 1>}, {pipeline_mode = #tpu.pipeline_mode<synchronous>, transform_indices = @transform_3, window_bounds = array<i64: 16, 36>}, {pipeline_mode = #tpu.pipeline_mode<synchronous>, transform_indices = @transform_4, window_bounds = array<i64: 16, 1>}, {transform_indices = @transform_5, window_bounds = array<i64: 1, 8, 384>}]} {
    %c0 = arith.constant 0 : index
    %c0_0 = arith.constant 0 : index
    %c0_1 = arith.constant 0 : index
    %0 = vector.load %arg1[%c0, %c0_0, %c0_1] : memref<1x4x512xbf16, #tpu.memory_space<vmem>>, vector<1x4x512xbf16>
    %1 = vector.shape_cast %0 : vector<1x4x512xbf16> to vector<4x512xbf16>
    %c0_2 = arith.constant 0 : index
    %c0_3 = arith.constant 0 : index
    %2 = vector.load %arg2[%c0_2, %c0_3] : memref<8x4xbf16, #tpu.memory_space<vmem>>, vector<8x4xbf16>
    %cst = arith.constant dense<0.000000e+00> : vector<8x512xf32>
    %3 = tpu.matmul %2, %1, %cst {dimension_numbers = #tpu.dot_dimension_numbers<[1], [0], [0], [1], [0, 0, 1, 1], [], []>} : vector<8x4xbf16>, vector<4x512xbf16>, vector<8x512xf32> -> vector<8x512xf32>
    %c0_4 = arith.constant 0 : index
    %c0_5 = arith.constant 0 : index
    %4 = vector.load %arg3[%c0_4, %c0_5] : memref<8x1xf32, #tpu.memory_space<vmem>>, vector<8x1xf32>
    %5 = vector.broadcast %4 : vector<8x1xf32> to vector<8x512xf32>
    %6 = arith.addf %3, %5 : vector<8x512xf32>
    %7 = vector.extract_strided_slice %6 {offsets = [0, 0], sizes = [4, 512], strides = [1, 1]} : vector<8x512xf32> to vector<4x512xf32>
    %8 = vector.extract_strided_slice %6 {offsets = [4, 0], sizes = [4, 512], strides = [1, 1]} : vector<8x512xf32> to vector<4x512xf32>
    %9 = arith.maximumf %7, %8 : vector<4x512xf32>
    %10 = tpu.iota {dimensions = array<i32: 1>} : vector<1x512xi32>
    %11 = arith.sitofp %10 : vector<1x512xi32> to vector<1x512xf32>
    %cst_6 = arith.constant 5.000000e-01 : f32
    %12 = vector.broadcast %cst_6 : f32 to vector<1x512xf32>
    %13 = arith.addf %11, %12 : vector<1x512xf32>
    %cst_7 = arith.constant 0.055555556 : f32
    %14 = vector.broadcast %cst_7 : f32 to vector<1x512xf32>
    %15 = arith.mulf %13, %14 : vector<1x512xf32>
    %16 = arith.fptosi %15 : vector<1x512xf32> to vector<1x512xi32>
    %c18_i32 = arith.constant 18 : i32
    %17 = vector.broadcast %c18_i32 : i32 to vector<1x512xi32>
    %18 = arith.muli %16, %17 : vector<1x512xi32>
    %19 = arith.subi %10, %18 : vector<1x512xi32>
    %c1_i32 = arith.constant 1 : i32
    %20 = vector.broadcast %c1_i32 : i32 to vector<1x512xi32>
    %21 = arith.cmpi sge, %16, %20 : vector<1x512xi32>
    %c17_i32 = arith.constant 17 : i32
    %22 = vector.broadcast %c17_i32 : i32 to vector<1x512xi32>
    %23 = arith.cmpi slt, %16, %22 : vector<1x512xi32>
    %24 = arith.andi %21, %23 : vector<1x512xi1>
    %c1_i32_8 = arith.constant 1 : i32
    %25 = vector.broadcast %c1_i32_8 : i32 to vector<1x512xi32>
    %26 = arith.cmpi sge, %19, %25 : vector<1x512xi32>
    %27 = arith.andi %24, %26 : vector<1x512xi1>
    %c17_i32_9 = arith.constant 17 : i32
    %28 = vector.broadcast %c17_i32_9 : i32 to vector<1x512xi32>
    %29 = arith.cmpi slt, %19, %28 : vector<1x512xi32>
    %30 = arith.andi %27, %29 : vector<1x512xi1>
    %cst_10 = arith.constant 0.000000e+00 : f32
    %31 = vector.shape_cast %30 : vector<1x512xi1> to vector<1x512xi1>
    %32 = vector.broadcast %31 : vector<1x512xi1> to vector<4x512xi1>
    %33 = vector.broadcast %cst_10 : f32 to vector<4x512xf32>
    %34 = arith.select %32, %9, %33 : vector<4x512xi1>, vector<4x512xf32>
    %35 = arith.truncf %34 : vector<4x512xf32> to vector<4x512xbf16>
    %c0_11 = arith.constant 0 : index
    %c0_12 = arith.constant 0 : index
    %36 = vector.load %arg7[%c0_11, %c0_12] : memref<4x512xbf16, #tpu.memory_space<vmem>>, vector<4x512xbf16>
    tpu.vector_store %arg7[%c0_11, %c0_12], %35 {strides = array<i32>} : memref<4x512xbf16, #tpu.memory_space<vmem>>, vector<4x512xbf16>,
    %c0_13 = arith.constant 0 : index
    %c0_14 = arith.constant 0 : index
    %37 = vector.load %arg7[%c0_13, %c0_14] : memref<4x512xbf16, #tpu.memory_space<vmem>>, vector<4x384xbf16>
    %c0_15 = arith.constant 0 : index
    %c0_16 = arith.constant 0 : index
    %38 = vector.load %arg8[%c0_15, %c0_16] : memref<36x384xbf16, #tpu.memory_space<vmem>>, vector<4x384xbf16>
    tpu.vector_store %arg8[%c0_15, %c0_16], %37 {strides = array<i32>} : memref<36x384xbf16, #tpu.memory_space<vmem>>, vector<4x384xbf16>,
    %c0_17 = arith.constant 0 : index
    %c1 = arith.constant 1 : index
    %39 = vector.load %arg7[%c0_17, %c1] : memref<4x512xbf16, #tpu.memory_space<vmem>>, vector<4x384xbf16>
    %c4 = arith.constant 4 : index
    %c0_18 = arith.constant 0 : index
    %40 = vector.load %arg8[%c4, %c0_18] : memref<36x384xbf16, #tpu.memory_space<vmem>>, vector<4x384xbf16>
    tpu.vector_store %arg8[%c4, %c0_18], %39 {strides = array<i32>} : memref<36x384xbf16, #tpu.memory_space<vmem>>, vector<4x384xbf16>,
    %c0_19 = arith.constant 0 : index
    %c2 = arith.constant 2 : index
    %41 = vector.load %arg7[%c0_19, %c2] : memref<4x512xbf16, #tpu.memory_space<vmem>>, vector<4x384xbf16>
    %c8 = arith.constant 8 : index
    %c0_20 = arith.constant 0 : index
    %42 = vector.load %arg8[%c8, %c0_20] : memref<36x384xbf16, #tpu.memory_space<vmem>>, vector<4x384xbf16>
    tpu.vector_store %arg8[%c8, %c0_20], %41 {strides = array<i32>} : memref<36x384xbf16, #tpu.memory_space<vmem>>, vector<4x384xbf16>,
    %c0_21 = arith.constant 0 : index
    %c18 = arith.constant 18 : index
    %43 = vector.load %arg7[%c0_21, %c18] : memref<4x512xbf16, #tpu.memory_space<vmem>>, vector<4x384xbf16>
    %c12 = arith.constant 12 : index
    %c0_22 = arith.constant 0 : index
    %44 = vector.load %arg8[%c12, %c0_22] : memref<36x384xbf16, #tpu.memory_space<vmem>>, vector<4x384xbf16>
    tpu.vector_store %arg8[%c12, %c0_22], %43 {strides = array<i32>} : memref<36x384xbf16, #tpu.memory_space<vmem>>, vector<4x384xbf16>,
    %c0_23 = arith.constant 0 : index
    %c19 = arith.constant 19 : index
    %45 = vector.load %arg7[%c0_23, %c19] : memref<4x512xbf16, #tpu.memory_space<vmem>>, vector<4x384xbf16>
    %c16 = arith.constant 16 : index
    %c0_24 = arith.constant 0 : index
    %46 = vector.load %arg8[%c16, %c0_24] : memref<36x384xbf16, #tpu.memory_space<vmem>>, vector<4x384xbf16>
    tpu.vector_store %arg8[%c16, %c0_24], %45 {strides = array<i32>} : memref<36x384xbf16, #tpu.memory_space<vmem>>, vector<4x384xbf16>,
    %c0_25 = arith.constant 0 : index
    %c20 = arith.constant 20 : index
    %47 = vector.load %arg7[%c0_25, %c20] : memref<4x512xbf16, #tpu.memory_space<vmem>>, vector<4x384xbf16>
    %c20_26 = arith.constant 20 : index
    %c0_27 = arith.constant 0 : index
    %48 = vector.load %arg8[%c20_26, %c0_27] : memref<36x384xbf16, #tpu.memory_space<vmem>>, vector<4x384xbf16>
    tpu.vector_store %arg8[%c20_26, %c0_27], %47 {strides = array<i32>} : memref<36x384xbf16, #tpu.memory_space<vmem>>, vector<4x384xbf16>,
    %c0_28 = arith.constant 0 : index
    %c36 = arith.constant 36 : index
    %49 = vector.load %arg7[%c0_28, %c36] : memref<4x512xbf16, #tpu.memory_space<vmem>>, vector<4x384xbf16>
    %c24 = arith.constant 24 : index
    %c0_29 = arith.constant 0 : index
    %50 = vector.load %arg8[%c24, %c0_29] : memref<36x384xbf16, #tpu.memory_space<vmem>>, vector<4x384xbf16>
    tpu.vector_store %arg8[%c24, %c0_29], %49 {strides = array<i32>} : memref<36x384xbf16, #tpu.memory_space<vmem>>, vector<4x384xbf16>,
    %c0_30 = arith.constant 0 : index
    %c37 = arith.constant 37 : index
    %51 = vector.load %arg7[%c0_30, %c37] : memref<4x512xbf16, #tpu.memory_space<vmem>>, vector<4x384xbf16>
    %c28 = arith.constant 28 : index
    %c0_31 = arith.constant 0 : index
    %52 = vector.load %arg8[%c28, %c0_31] : memref<36x384xbf16, #tpu.memory_space<vmem>>, vector<4x384xbf16>
    tpu.vector_store %arg8[%c28, %c0_31], %51 {strides = array<i32>} : memref<36x384xbf16, #tpu.memory_space<vmem>>, vector<4x384xbf16>,
    %c0_32 = arith.constant 0 : index
    %c38 = arith.constant 38 : index
    %53 = vector.load %arg7[%c0_32, %c38] : memref<4x512xbf16, #tpu.memory_space<vmem>>, vector<4x384xbf16>
    %c32 = arith.constant 32 : index
    %c0_33 = arith.constant 0 : index
    %54 = vector.load %arg8[%c32, %c0_33] : memref<36x384xbf16, #tpu.memory_space<vmem>>, vector<4x384xbf16>
    tpu.vector_store %arg8[%c32, %c0_33], %53 {strides = array<i32>} : memref<36x384xbf16, #tpu.memory_space<vmem>>, vector<4x384xbf16>,
    %c0_34 = arith.constant 0 : index
    %c0_35 = arith.constant 0 : index
    %55 = vector.load %arg4[%c0_34, %c0_35] : memref<16x36xbf16, #tpu.memory_space<vmem>>, vector<16x36xbf16>
    %c0_36 = arith.constant 0 : index
    %c0_37 = arith.constant 0 : index
    %56 = vector.load %arg8[%c0_36, %c0_37] : memref<36x384xbf16, #tpu.memory_space<vmem>>, vector<36x384xbf16>
    %cst_38 = arith.constant dense<0.000000e+00> : vector<16x384xf32>
    %57 = tpu.matmul %55, %56, %cst_38 {dimension_numbers = #tpu.dot_dimension_numbers<[1], [0], [0], [1], [0, 0, 1, 1], [], []>} : vector<16x36xbf16>, vector<36x384xbf16>, vector<16x384xf32> -> vector<16x384xf32>
    %c0_39 = arith.constant 0 : index
    %c0_40 = arith.constant 0 : index
    %58 = vector.load %arg5[%c0_39, %c0_40] : memref<16x1xf32, #tpu.memory_space<vmem>>, vector<16x1xf32>
    %59 = vector.broadcast %58 : vector<16x1xf32> to vector<16x384xf32>
    %60 = arith.addf %57, %59 : vector<16x384xf32>
    %61 = vector.extract_strided_slice %60 {offsets = [0, 0], sizes = [8, 384], strides = [1, 1]} : vector<16x384xf32> to vector<8x384xf32>
    %62 = vector.extract_strided_slice %60 {offsets = [8, 0], sizes = [8, 384], strides = [1, 1]} : vector<16x384xf32> to vector<8x384xf32>
    %63 = arith.maximumf %61, %62 : vector<8x384xf32>
    %64 = arith.truncf %63 : vector<8x384xf32> to vector<8x384xbf16>
    %c0_41 = arith.constant 0 : index
    %c0_42 = arith.constant 0 : index
    %c0_43 = arith.constant 0 : index
    %65 = vector.load %arg6[%c0_41, %c0_42, %c0_43] : memref<1x8x384xbf16, #tpu.memory_space<vmem>>, vector<1x8x384xbf16>
    %66 = vector.shape_cast %65 : vector<1x8x384xbf16> to vector<8x384xbf16>
    %67 = vector.shape_cast %64 : vector<8x384xbf16> to vector<1x8x384xbf16>
    tpu.vector_store %arg6[%c0_41, %c0_42, %c0_43], %67 {strides = array<i32>} : memref<1x8x384xbf16, #tpu.memory_space<vmem>>, vector<1x8x384xbf16>,
    return
  }
  func.func @transform_0(%arg0: i32) -> (i32, i32, i32) {
    %c0_i32 = arith.constant 0 : i32
    %c0_i32_0 = arith.constant 0 : i32
    %c0_i32_1 = arith.constant 0 : i32
    return %arg0, %c0_i32, %c0_i32_0 : i32, i32, i32
  }
  func.func @transform_1(%arg0: i32) -> (i32, i32) {
    %c0_i32 = arith.constant 0 : i32
    %c0_i32_0 = arith.constant 0 : i32
    %c0_i32_1 = arith.constant 0 : i32
    return %c0_i32, %c0_i32_0 : i32, i32
  }
  func.func @transform_2(%arg0: i32) -> (i32, i32) {
    %c0_i32 = arith.constant 0 : i32
    %c0_i32_0 = arith.constant 0 : i32
    %c0_i32_1 = arith.constant 0 : i32
    return %c0_i32, %c0_i32_0 : i32, i32
  }
  func.func @transform_3(%arg0: i32) -> (i32, i32) {
    %c0_i32 = arith.constant 0 : i32
    %c0_i32_0 = arith.constant 0 : i32
    %c0_i32_1 = arith.constant 0 : i32
    return %c0_i32, %c0_i32_0 : i32, i32
  }
  func.func @transform_4(%arg0: i32) -> (i32, i32) {
    %c0_i32 = arith.constant 0 : i32
    %c0_i32_0 = arith.constant 0 : i32
    %c0_i32_1 = arith.constant 0 : i32
    return %c0_i32, %c0_i32_0 : i32, i32
  }
  func.func @transform_5(%arg0: i32) -> (i32, i32, i32) {
    %c0_i32 = arith.constant 0 : i32
    %c0_i32_0 = arith.constant 0 : i32
    %c0_i32_1 = arith.constant 0 : i32
    return %arg0, %c0_i32, %c0_i32_0 : i32, i32, i32
  }
}

</mosaic_0001>

<llo_original>
// kernel: group_forward.1
$region0: #{group_forward.1}
  #allocation0 [shape = 'u32[]', space=smem, size = 0x4, offset = 0x4, fixed_abs, tag = 'smem constant byte address 0x4 - core index']
  #allocation1 [shape = 'u32[144,128]{1,0:T(1,128)}', space=vmem, size = 0x12000, scoped, tag = 'internal scratch']
  #allocation2 [shape = 'bf16[4,512]{1,0:T(4,128)(2,1)}', space=vmem, size = 0x1000, scoped, tag = 'scratch operand']
  #allocation3 [shape = 'bf16[36,384]{1,0:T(8,128)(2,1)}', space=vmem, size = 0x7800, scoped, tag = 'scratch operand']
  %s0 = inlined_call_operand.vmem [shape: bf16[2,4,512], index: 0, kind: input, shape index: {}]
  %s1 = inlined_call_operand.vmem [shape: bf16[8,4], index: 1, kind: input, shape index: {}]
  %s2 = inlined_call_operand.vmem [shape: f32[8,1], index: 2, kind: input, shape index: {}]
  %s3 = inlined_call_operand.vmem [shape: bf16[16,36], index: 3, kind: input, shape index: {}]
  %s4 = inlined_call_operand.vmem [shape: f32[16,1], index: 4, kind: input, shape index: {}]
  %s5 = inlined_call_operand.vmem [shape: bf16[2,8,384], index: 5, kind: output, shape index: {}]
  %s6 = sld [smem:[#allocation0]]
  $region53: #{group_forward.1} parent=0
    _
  %s8 = ssub.s32 1, %s6
  %s9 = scalar_select 0, %s8, %s6
  loop: start=0, step=1, limit=4
  $region2: #{group_forward.1} parent=0 // loop_pre_header
    _
  $region3: #{group_forward.1} parent=0 // loop_header
    %s11 = sphi 0, %s15
    %p12 = scmp.ge.s32.totalorder %s11, 4
    %s21 = sphi 0, %s23
    %s24 = sphi 0, %s21
    %s25 = sphi 0, %s24
    %s41 = sphi 0, %s25
    %s45 = sphi 0, %s45
    %s47 = sphi 0, %s45
    %s48 = sphi 0, %s47
    %s62 = sphi 0, %s48
    %s66 = sphi 0, %s66
    %s68 = sphi 0, %s66
    %s69 = sphi 0, %s68
    %s83 = sphi 0, %s69
    %s87 = sphi 0, %s87
    %s89 = sphi 0, %s87
    %s90 = sphi 0, %s89
    %s104 = sphi 0, %s90
    %s108 = sphi 0, %s108
    %s110 = sphi 0, %s108
    %s111 = sphi 0, %s110
    %s125 = sphi 0, %s111
    %s131 = sphi 0, %s133
    %s134 = sphi 0, %s131
    %s135 = sphi 0, %s134
    %s151 = sphi 0, %s135
  $region4: #{group_forward.1} parent=0 // loop_header_branch
    %14 = sbr.rel (%p12) target = $region8
  $region5: #{group_forward.1} parent=0 // loop_body
    %s16 = ssub.s32 %s11, 1
    %s17 = ssub.s32 %s11, 2
    %s18 = sadd.s32 %s11, 1
    %s19 = ssub.s32 %s11, %s18
    %p20 = scmp.eq.s32.totalorder %s19, 0
    %s22 = sadd.s32 %s21, 1
    %s23 = scalar_select %p20, %s21, %s22
    %p26 = pneg %p20
    %p27 = scmp.eq.s32.totalorder %s11, 1
    %p28 = por %p26, %p27
    %p29 = scmp.ne.s32.totalorder %s21, %s24
    %p30 = scmp.eq.s32.totalorder %s11, 0
    %p31 = por %p29, %p30
    %p32 = scmp.ne.s32.totalorder %s21, %s24
    %p33 = scmp.eq.s32.totalorder %s16, 1
    %p34 = por %p32, %p33
    %p35 = scmp.ne.s32.totalorder %s24, %s25
    %p36 = scmp.eq.s32.totalorder %s16, 0
    %p37 = por %p35, %p36
    %p38 = scmp.ne.s32.totalorder %s24, %s25
    %p39 = scmp.eq.s32.totalorder %s17, 1
    %p40 = por %p38, %p39
    %p42 = scmp.ne.s32.totalorder %s25, %s41
    %p43 = scmp.eq.s32.totalorder %s17, 0
    %p44 = por %p42, %p43
    %s46 = sadd.s32 %s45, 1
    %p49 = scmp.eq.s32.totalorder %s11, 1
    %p50 = scmp.ne.s32.totalorder %s45, %s47
    %p51 = scmp.eq.s32.totalorder %s11, 0
    %p52 = por %p50, %p51
    %p53 = scmp.ne.s32.totalorder %s45, %s47
    %p54 = scmp.eq.s32.totalorder %s16, 1
    %p55 = por %p53, %p54
    %p56 = scmp.ne.s32.totalorder %s47, %s48
    %p57 = scmp.eq.s32.totalorder %s16, 0
    %p58 = por %p56, %p57
    %p59 = scmp.ne.s32.totalorder %s47, %s48
    %p60 = scmp.eq.s32.totalorder %s17, 1
    %p61 = por %p59, %p60
    %p63 = scmp.ne.s32.totalorder %s48, %s62
    %p64 = scmp.eq.s32.totalorder %s17, 0
    %p65 = por %p63, %p64
    %s67 = sadd.s32 %s66, 1
    %p70 = scmp.eq.s32.totalorder %s11, 1
    %p71 = scmp.ne.s32.totalorder %s66, %s68
    %p72 = scmp.eq.s32.totalorder %s11, 0
    %p73 = por %p71, %p72
    %p74 = scmp.ne.s32.totalorder %s66, %s68
    %p75 = scmp.eq.s32.totalorder %s16, 1
    %p76 = por %p74, %p75
    %p77 = scmp.ne.s32.totalorder %s68, %s69
    %p78 = scmp.eq.s32.totalorder %s16, 0
    %p79 = por %p77, %p78
    %p80 = scmp.ne.s32.totalorder %s68, %s69
    %p81 = scmp.eq.s32.totalorder %s17, 1
    %p82 = por %p80, %p81
    %p84 = scmp.ne.s32.totalorder %s69, %s83
    %p85 = scmp.eq.s32.totalorder %s17, 0
    %p86 = por %p84, %p85
    %s88 = sadd.s32 %s87, 1
    %p91 = scmp.eq.s32.totalorder %s11, 1
    %p92 = scmp.ne.s32.totalorder %s87, %s89
    %p93 = scmp.eq.s32.totalorder %s11, 0
    %p94 = por %p92, %p93
    %p95 = scmp.ne.s32.totalorder %s87, %s89
    %p96 = scmp.eq.s32.totalorder %s16, 1
    %p97 = por %p95, %p96
    %p98 = scmp.ne.s32.totalorder %s89, %s90
    %p99 = scmp.eq.s32.totalorder %s16, 0
    %p100 = por %p98, %p99
    %p101 = scmp.ne.s32.totalorder %s89, %s90
    %p102 = scmp.eq.s32.totalorder %s17, 1
    %p103 = por %p101, %p102
    %p105 = scmp.ne.s32.totalorder %s90, %s104
    %p106 = scmp.eq.s32.totalorder %s17, 0
    %p107 = por %p105, %p106
    %s109 = sadd.s32 %s108, 1
    %p112 = scmp.eq.s32.totalorder %s11, 1
    %p113 = scmp.ne.s32.totalorder %s108, %s110
    %p114 = scmp.eq.s32.totalorder %s11, 0
    %p115 = por %p113, %p114
    %p116 = scmp.ne.s32.totalorder %s108, %s110
    %p117 = scmp.eq.s32.totalorder %s16, 1
    %p118 = por %p116, %p117
    %p119 = scmp.ne.s32.totalorder %s110, %s111
    %p120 = scmp.eq.s32.totalorder %s16, 0
    %p121 = por %p119, %p120
    %p122 = scmp.ne.s32.totalorder %s110, %s111
    %p123 = scmp.eq.s32.totalorder %s17, 1
    %p124 = por %p122, %p123
    %p126 = scmp.ne.s32.totalorder %s111, %s125
    %p127 = scmp.eq.s32.totalorder %s17, 0
    %p128 = por %p126, %p127
    %s129 = ssub.s32 %s11, %s18
    %p130 = scmp.eq.s32.totalorder %s129, 0
    %s132 = sadd.s32 %s131, 1
    %s133 = scalar_select %p130, %s131, %s132
    %p136 = pneg %p130
    %p137 = scmp.eq.s32.totalorder %s11, 1
    %p138 = por %p136, %p137
    %p139 = scmp.ne.s32.totalorder %s131, %s134
    %p140 = scmp.eq.s32.totalorder %s11, 0
    %p141 = por %p139, %p140
    %p142 = scmp.ne.s32.totalorder %s131, %s134
    %p143 = scmp.eq.s32.totalorder %s16, 1
    %p144 = por %p142, %p143
    %p145 = scmp.ne.s32.totalorder %s134, %s135
    %p146 = scmp.eq.s32.totalorder %s16, 0
    %p147 = por %p145, %p146
    %p148 = scmp.ne.s32.totalorder %s134, %s135
    %p149 = scmp.eq.s32.totalorder %s17, 1
    %p150 = por %p148, %p149
    %p152 = scmp.ne.s32.totalorder %s135, %s151
    %p153 = scmp.eq.s32.totalorder %s17, 0
    %p154 = por %p152, %p153
    %p155 = scmp.le.s32.totalorder 1, %s11
    %p156 = scmp.lt.s32.totalorder %s11, 3
    %p157 = pnand %p155, %p156
    %p158 = pneg %p157
    // Predicated region
    $region9: #{group_forward.1} parent=5 // pred_check
      _
    $region10: #{group_forward.1} parent=5 // pred_check_branch
      %160 = sbr.rel (%p157) target = $region12
    $region11: #{group_forward.1} parent=5 // pred_region
      %s161 = ssub.s32 %s11, 1
      // Predicated region
      $region13: #{group_forward.1} parent=11 // pred_check
        %p162 = pneg %p58
      $region14: #{group_forward.1} parent=11 // pred_check_branch
        %164 = sbr.rel (%p162) target = $region16
      $region15: #{group_forward.1} parent=11 // pred_region
        _
      $region16: #{group_forward.1} parent=11 // pred_fallthru
        _
      // Predicated region
      $region17: #{group_forward.1} parent=11 // pred_check
        %p165 = pneg %p79
      $region18: #{group_forward.1} parent=11 // pred_check_branch
        %167 = sbr.rel (%p165) target = $region20
      $region19: #{group_forward.1} parent=11 // pred_region
        _
      $region20: #{group_forward.1} parent=11 // pred_fallthru
        _
      // Predicated region
      $region21: #{group_forward.1} parent=11 // pred_check
        %p168 = pneg %p100
      $region22: #{group_forward.1} parent=11 // pred_check_branch
        %170 = sbr.rel (%p168) target = $region24
      $region23: #{group_forward.1} parent=11 // pred_region
        _
      $region24: #{group_forward.1} parent=11 // pred_fallthru
        _
      // Predicated region
      $region25: #{group_forward.1} parent=11 // pred_check
        %p171 = pneg %p121
      $region26: #{group_forward.1} parent=11 // pred_check_branch
        %173 = sbr.rel (%p171) target = $region28
      $region27: #{group_forward.1} parent=11 // pred_region
        _
      $region28: #{group_forward.1} parent=11 // pred_fallthru
        _
    $region12: #{group_forward.1} parent=5 // pred_fallthru
      _
    %p174 = scmp.lt.s32.totalorder %s11, 2
    // Predicated region
    $region29: #{group_forward.1} parent=5 // pred_check
      %p175 = pneg %p174
    $region30: #{group_forward.1} parent=5 // pred_check_branch
      %177 = sbr.rel (%p175) target = $region32
    $region31: #{group_forward.1} parent=5 // pred_region
      // Predicated region
      $region33: #{group_forward.1} parent=31 // pred_check
        %p178 = pneg %p31
      $region34: #{group_forward.1} parent=31 // pred_check_branch
        %180 = sbr.rel (%p178) target = $region36
      $region35: #{group_forward.1} parent=31 // pred_region
        %p181 = scmp.lt.s32.totalorder %s11, 1
        %s182 = scalar_select %p181, %s11, 1
        %s183 = smul.addr %s182, 4
        %s184 = smul.addr %s183, 2
        %s185 = scalar_lea.vmem %s0, %s184
      $region36: #{group_forward.1} parent=31 // pred_fallthru
        _
    $region32: #{group_forward.1} parent=5 // pred_fallthru
      _
    %p186 = scmp.le.s32.totalorder 1, %s11
    %p187 = scmp.lt.s32.totalorder %s11, 3
    %p188 = pnand %p186, %p187
    %p189 = pneg %p188
    // Predicated region
    $region37: #{group_forward.1} parent=5 // pred_check
      _
    $region38: #{group_forward.1} parent=5 // pred_check_branch
      %191 = sbr.rel (%p188) target = $region40
    $region39: #{group_forward.1} parent=5 // pred_region
      %s192 = ssub.s32 %s11, 1
      %p193 = scmp.lt.s32.totalorder %s16, 1
      %s194 = scalar_select %p193, %s16, 1
      %s195 = smul.addr %s194, 4
      %s196 = smul.addr %s195, 2
      %s197 = scalar_lea.vmem %s0, %s196
      %p198 = pneg %p37
      %p199 = pneg %p34
      %p200 = pneg %p58
      %p201 = pneg %p55
      %p202 = pneg %p79
      %p203 = pneg %p76
      %p204 = pneg %p100
      %p205 = pneg %p97
      %p206 = pneg %p121
      %p207 = pneg %p118
      %p208 = pneg %p147
      %p209 = pneg %p144
      %p210 = scmp.lt.s32.totalorder %s16, 1
      %s211 = scalar_select %p210, %s16, 1
      %s212 = smul.addr %s211, 3
      %s213 = smul.addr %s212, 4
      %s214 = scalar_lea.vmem %s5, %s213
      %p215 = scmp.lt.s32.totalorder %s16, 1
      %s216 = scalar_select %p215, %s16, 1
      %s217 = smul.addr %s216, 4
      %s218 = smul.addr %s217, 2
      %s219 = scalar_lea.vmem %s0, %s218
      %p220 = scmp.lt.s32.totalorder %s16, 1
      %s221 = scalar_select %p220, %s16, 1
      %s222 = smul.addr %s221, 3
      %s223 = smul.addr %s222, 4
      %s224 = scalar_lea.vmem %s5, %s223
      %v226 = vld [vmem:[%s219] sm:$0xff]
      %v227 = vld [vmem:[%s1] sm:$0xf]
      %v228 = vld [vmem:[%s2] sm:$0xff]
      %230 = vset.pattern.permute.xlu0 0
      %231 = vperm.xlu0 %230, %v228
      %v232 = vpop.permute.xlu0 %231
      %v235 = vcombine.high %v226, %v226
      %v237 = vunpack.c.l.s4 1983009808
      %v238 = vunpack.c.0.s8 %v237
      %v239 = vlaneseq
      %v240 = vshrl.u32 %v239, 7
      %v241 = vsub.s32 %v238, %v240
      %v242 = vrot.slane %v226, %v241
      %v244 = vunpack.c.l.s4 1983009808
      %v245 = vunpack.c.0.s8 %v244
      %v246 = vlaneseq
      %v247 = vshrl.u32 %v246, 7
      %v248 = vsub.s32 %v245, %v247
      %v249 = vrot.slane %v235, %v248
      %v250 = vcombine.high %v242, %v242
      %v251 = vcombine.high %v249, %v249
      %vm252 = vcmask 31744
      %v254 = vsel %vm252, %v227, 0
      %vm256 = vcmask 1041408
      %v258 = vsel %vm256, %v242, 0
      %v261 = vsel %vm256, %v250, 0
      %v264 = vsel %vm256, %v249, 0
      %v267 = vsel %vm256, %v251, 0
      %269 = vmatprep.subr.bf16.mxu0 0
      %270 = vmatpush1.bf16.msra.mxu0 0
      %271 = vmatprep.subr.bf16.mxu0 0
      %272 = vmatpush1.bf16.msra.mxu0 0
      %273 = vmatprep.subr.bf16.mxu0 0
      %274 = vmatpush1.bf16.msra.mxu0 0
      %275 = vmatprep.subr.bf16.mxu0 0
      %276 = vmatpush1.bf16.msra.mxu0 0
      %277 = vmatprep.subr.bf16.mxu0 0
      %278 = vmatpush1.bf16.msra.mxu0 0
      %279 = vmatprep.subr.bf16.mxu0 0
      %280 = vmatpush1.bf16.msra.mxu0 0
      %281 = vmatprep.subr.bf16.mxu0 0
      %282 = vmatpush1.bf16.msra.mxu0 0
      %283 = vmatprep.subr.bf16.mxu0 %v261
      %284 = vmatpush1.bf16.msra.mxu0 %v258
      %285 = vmatprep.subr.bf16.mxu0 0
      %286 = vmatpush2.bf16.msra.mxu0 0
      %287 = vmatprep.subr.bf16.mxu0 0
      %288 = vmatpush2.bf16.msra.mxu0 0
      %289 = vmatprep.subr.bf16.mxu0 0
      %290 = vmatpush2.bf16.msra.mxu0 0
      %291 = vmatprep.subr.bf16.mxu0 0
      %292 = vmatpush2.bf16.msra.mxu0 0
      %293 = vmatprep.subr.bf16.mxu0 0
      %294 = vmatpush2.bf16.msra.mxu0 0
      %295 = vmatprep.subr.bf16.mxu0 0
      %296 = vmatpush2.bf16.msra.mxu0 0
      %297 = vmatprep.subr.bf16.mxu0 0
      %298 = vmatpush2.bf16.msra.mxu0 0
      %299 = vmatprep.subr.bf16.mxu0 0
      %300 = vmatpush2.bf16.msra.mxu0 0
      %301 = vmatprep.mubr.bf16.mxu0 0
      %302 = vmatmul.mubr.bf16.gmra.mxu0 %v254
      %v303 = vpop.f32.mrf.mxu0
      %v304 = vadd.f32 %v232, %v303
      %v305 = vpop.f32.mrf.mxu0
      %v306 = vadd.f32 %v232, %v305
      %v307 = vpop.f32.mrf.mxu0
      %v308 = vpop.f32.mrf.mxu0
      %309 = vdwg.mxu0
      %310 = vmatprep.subr.bf16.mxu0 0
      %311 = vmatpush1.bf16.msra.mxu0 0
      %312 = vmatprep.subr.bf16.mxu0 0
      %313 = vmatpush1.bf16.msra.mxu0 0
      %314 = vmatprep.subr.bf16.mxu0 0
      %315 = vmatpush1.bf16.msra.mxu0 0
      %316 = vmatprep.subr.bf16.mxu0 0
      %317 = vmatpush1.bf16.msra.mxu0 0
      %318 = vmatprep.subr.bf16.mxu0 0
      %319 = vmatpush1.bf16.msra.mxu0 0
      %320 = vmatprep.subr.bf16.mxu0 0
      %321 = vmatpush1.bf16.msra.mxu0 0
      %322 = vmatprep.subr.bf16.mxu0 0
      %323 = vmatpush1.bf16.msra.mxu0 0
      %324 = vmatprep.subr.bf16.mxu0 %v267
      %325 = vmatpush1.bf16.msra.mxu0 %v264
      %326 = vmatprep.subr.bf16.mxu0 0
      %327 = vmatpush2.bf16.msra.mxu0 0
      %328 = vmatprep.subr.bf16.mxu0 0
      %329 = vmatpush2.bf16.msra.mxu0 0
      %330 = vmatprep.subr.bf16.mxu0 0
      %331 = vmatpush2.bf16.msra.mxu0 0
      %332 = vmatprep.subr.bf16.mxu0 0
      %333 = vmatpush2.bf16.msra.mxu0 0
      %334 = vmatprep.subr.bf16.mxu0 0
      %335 = vmatpush2.bf16.msra.mxu0 0
      %336 = vmatprep.subr.bf16.mxu0 0
      %337 = vmatpush2.bf16.msra.mxu0 0
      %338 = vmatprep.subr.bf16.mxu0 0
      %339 = vmatpush2.bf16.msra.mxu0 0
      %340 = vmatprep.subr.bf16.mxu0 0
      %341 = vmatpush2.bf16.msra.mxu0 0
      %342 = vmatprep.mubr.bf16.mxu0 0
      %343 = vmatmul.mubr.bf16.gmra.mxu0 %v254
      %v344 = vpop.f32.mrf.mxu0
      %v345 = vadd.f32 %v232, %v344
      %v346 = vpop.f32.mrf.mxu0
      %v347 = vadd.f32 %v232, %v346
      %v348 = vpop.f32.mrf.mxu0
      %v349 = vpop.f32.mrf.mxu0
      %350 = vdwg.mxu0
      %v355 = vrot.slane %v304, 4
      %v356 = vrot.slane %v306, 4
      %v357 = vrot.slane %v345, 4
      %v358 = vrot.slane %v347, 4
      %v363 = vmax.f32 %v304, %v355
      %v364 = vmax.f32 %v306, %v356
      %v365 = vmax.f32 %v345, %v357
      %v366 = vmax.f32 %v347, %v358
      %v367 = vlaneseq
      %v368 = vand.u32 %v367, 127
      %v369 = vadd.s32 %v368, 128
      %v370 = vadd.s32 %v368, 256
      %v371 = vadd.s32 %v368, 384
      %v372 = vcvt.s32.f32 %v368
      %v373 = vcvt.s32.f32 %v369
      %v374 = vcvt.s32.f32 %v370
      %v375 = vcvt.s32.f32 %v371
      %v376 = vadd.f32 %v372, 0.5
      %v377 = vadd.f32 %v373, 0.5
      %v378 = vadd.f32 %v374, 0.5
      %v379 = vadd.f32 %v375, 0.5
      %v380 = vmul.f32 %v376, 0.055555556
      %v381 = vmul.f32 %v377, 0.055555556
      %v382 = vmul.f32 %v378, 0.055555556
      %v383 = vmul.f32 %v379, 0.055555556
      %v384 = vcvt.f32.s32.to.zero.pseudo %v380
      %v385 = vcvt.f32.s32.to.zero.pseudo %v381
      %v386 = vcvt.f32.s32.to.zero.pseudo %v382
      %v387 = vcvt.f32.s32.to.zero.pseudo %v383
      %v388 = vmul.u32 %v384, 18
      %v389 = vmul.u32 %v385, 18
      %v390 = vmul.u32 %v386, 18
      %v391 = vmul.u32 %v387, 18
      %v392 = vsub.s32 %v368, %v388
      %v393 = vsub.s32 %v369, %v389
      %v394 = vsub.s32 %v370, %v390
      %v395 = vsub.s32 %v371, %v391
      %vm396 = vcmp.ge.s32.totalorder %v384, 1
      %vm397 = vcmp.ge.s32.totalorder %v385, 1
      %vm398 = vcmp.ge.s32.totalorder %v386, 1
      %vm399 = vcmp.ge.s32.totalorder %v387, 1
      %vm400 = vcmp.lt.s32.totalorder %v384, 17
      %vm401 = vcmp.lt.s32.totalorder %v385, 17
      %vm402 = vcmp.lt.s32.totalorder %v386, 17
      %vm403 = vcmp.lt.s32.totalorder %v387, 17
      %vm404 = vmand %vm396, %vm400
      %vm405 = vmand %vm397, %vm401
      %vm406 = vmand %vm398, %vm402
      %vm407 = vmand %vm399, %vm403
      %vm408 = vcmp.ge.s32.totalorder %v392, 1
      %vm409 = vcmp.ge.s32.totalorder %v393, 1
      %vm410 = vcmp.ge.s32.totalorder %v394, 1
      %vm411 = vcmp.ge.s32.totalorder %v395, 1
      %vm412 = vmand %vm404, %vm408
      %vm413 = vmand %vm405, %vm409
      %vm414 = vmand %vm406, %vm410
      %vm415 = vmand %vm407, %vm411
      %vm416 = vcmp.lt.s32.totalorder %v392, 17
      %vm417 = vcmp.lt.s32.totalorder %v393, 17
      %vm418 = vcmp.lt.s32.totalorder %v394, 17
      %vm419 = vcmp.lt.s32.totalorder %v395, 17
      %vm420 = vmand %vm412, %vm416
      %vm421 = vmand %vm413, %vm417
      %vm422 = vmand %vm414, %vm418
      %vm423 = vmand %vm415, %vm419
      %v424 = vsel %vm420, 1, 0
      %v425 = vsel %vm421, 1, 0
      %v426 = vsel %vm422, 1, 0
      %v427 = vsel %vm423, 1, 0
      %vm428 = vcmp.eq.s32.totalorder %v424, 1
      %vm429 = vcmp.eq.s32.totalorder %v425, 1
      %vm430 = vcmp.eq.s32.totalorder %v426, 1
      %vm431 = vcmp.eq.s32.totalorder %v427, 1
      %v432 = vsel %vm428, %v363, 0.0
      %v433 = vsel %vm429, %v364, 0.0
      %v434 = vsel %vm430, %v365, 0.0
      %v435 = vsel %vm431, %v366, 0.0
      %v436 = vpack.c.bf16 %v432, %v432
      %v437 = vpack.c.bf16 %v433, %v433
      %v438 = vpack.c.bf16 %v434, %v434
      %v439 = vpack.c.bf16 %v435, %v435
      %v444 = vcombine.low %v436, %v437
      %v445 = vcombine.low %v438, %v439
      %v447 = vunpack.c.l.s4 1983009808
      %v448 = vunpack.c.0.s8 %v447
      %v449 = vlaneseq
      %v450 = vshrl.u32 %v449, 7
      %v451 = vsub.s32 %v448, %v450
      %v452 = vrot.slane %v444, %v451
      %v454 = vunpack.c.l.s4 1983009808
      %v455 = vunpack.c.0.s8 %v454
      %v456 = vlaneseq
      %v457 = vshrl.u32 %v456, 7
      %v458 = vsub.s32 %v455, %v457
      %v459 = vrot.slane %v445, %v458
      %v460 = vcombine.low %v452, %v459
      %462 = vst [vmem:[#allocation2] sm:$0xff] %v460
      %v463 = vld [vmem:[#allocation2] sm:$0x3f]
      %v465 = vcombine.high %v463, %v463
      %v467 = vunpack.c.l.s4 1983009808
      %v468 = vunpack.c.0.s8 %v467
      %v469 = vlaneseq
      %v470 = vshrl.u32 %v469, 7
      %v471 = vsub.s32 %v468, %v470
      %v472 = vrot.slane %v463, %v471
      %v474 = vunpack.c.l.s4 1983009808
      %v475 = vunpack.c.0.s8 %v474
      %v476 = vlaneseq
      %v477 = vshrl.u32 %v476, 7
      %v478 = vsub.s32 %v475, %v477
      %v479 = vrot.slane %v465, %v478
      %482 = vst [vmem:[#allocation3] sm:$0x33] %v472
      %483 = vst [vmem:[#allocation3 + $0x8] sm:$0x3] %v479
      %v484 = vld [vmem:[#allocation2] sm:$0xff]
      %v486 = vcombine.low %v484, %v484
      %v488 = vunpack.c.l.s4 1983009808
      %v489 = vunpack.c.0.s8 %v488
      %v490 = vlaneseq
      %v491 = vshrl.u32 %v490, 7
      %v492 = vsub.s32 %v489, %v491
      %v493 = vrot.slane %v486, %v492
      %v495 = vunpack.c.l.s4 1983009808
      %v496 = vunpack.c.0.s8 %v495
      %v497 = vlaneseq
      %v498 = vshrl.u32 %v497, 7
      %v499 = vsub.s32 %v496, %v498
      %v500 = vrot.slane %v484, %v499
      %501 = vrot.lane.b32.xlu0 %v493, 127
      %v502 = vpop.permute.xlu0 %501
      %503 = vrot.lane.b32.xlu0 %v500, 127
      %v504 = vpop.permute.xlu0 %503
      %v505 = vrot.slane %v502, 4
      %v506 = vrot.slane %v504, 4
      %vm507 = vcmask 1043456
      %v508 = vsel %vm507, %v505, %v506
      %vm509 = vcmask 1039360
      %v510 = vsel %vm509, %v502, %v508
      %v511 = vsel %vm509, %v504, %v506
      %514 = vst [vmem:[#allocation3] sm:$0xcc] %v510
      %515 = vst [vmem:[#allocation3 + $0x8] sm:$0xc] %v511
      %v516 = vld [vmem:[#allocation2] sm:$0xff]
      %v518 = vcombine.high %v516, %v516
      %v520 = vunpack.c.l.s4 1983009808
      %v521 = vunpack.c.0.s8 %v520
      %v522 = vlaneseq
      %v523 = vshrl.u32 %v522, 7
      %v524 = vsub.s32 %v521, %v523
      %v525 = vrot.slane %v516, %v524
      %v527 = vunpack.c.l.s4 1983009808
      %v528 = vunpack.c.0.s8 %v527
      %v529 = vlaneseq
      %v530 = vshrl.u32 %v529, 7
      %v531 = vsub.s32 %v528, %v530
      %v532 = vrot.slane %v518, %v531
      %533 = vrot.lane.b32.xlu0 %v525, 126
      %v534 = vpop.permute.xlu0 %533
      %535 = vrot.lane.b32.xlu0 %v532, 126
      %v536 = vpop.permute.xlu0 %535
      %v537 = vrot.slane %v534, 4
      %v538 = vrot.slane %v536, 4
      %v539 = vsel %vm507, %v537, %v538
      %vm540 = vcmask 1031168
      %v541 = vsel %vm540, %v534, %v539
      %v542 = vsel %vm540, %v536, %v538
      %545 = vst [vmem:[#allocation3 + $0xc] sm:$0x33] %v541
      %546 = vst [vmem:[#allocation3 + $0x14] sm:$0x3] %v542
      %v547 = vld [vmem:[#allocation2] sm:$0xff]
      %v549 = vcombine.low %v547, %v547
      %v551 = vunpack.c.l.s4 1983009808
      %v552 = vunpack.c.0.s8 %v551
      %v553 = vlaneseq
      %v554 = vshrl.u32 %v553, 7
      %v555 = vsub.s32 %v552, %v554
      %v556 = vrot.slane %v549, %v555
      %v558 = vunpack.c.l.s4 1983009808
      %v559 = vunpack.c.0.s8 %v558
      %v560 = vlaneseq
      %v561 = vshrl.u32 %v560, 7
      %v562 = vsub.s32 %v559, %v561
      %v563 = vrot.slane %v547, %v562
      %564 = vrot.lane.b32.xlu0 %v556, 110
      %v565 = vpop.permute.xlu0 %564
      %566 = vrot.lane.b32.xlu0 %v563, 110
      %v567 = vpop.permute.xlu0 %566
      %v568 = vrot.slane %v565, 4
      %v569 = vrot.slane %v567, 4
      %v570 = vsel %vm507, %v568, %v569
      %vm571 = vcmask 900096
      %v572 = vsel %vm571, %v565, %v570
      %v573 = vsel %vm571, %v567, %v569
      %576 = vst [vmem:[#allocation3 + $0xc] sm:$0xcc] %v572
      %577 = vst [vmem:[#allocation3 + $0x14] sm:$0xc] %v573
      %v578 = vld [vmem:[#allocation2] sm:$0xff]
      %v580 = vcombine.high %v578, %v578
      %v582 = vunpack.c.l.s4 1983009808
      %v583 = vunpack.c.0.s8 %v582
      %v584 = vlaneseq
      %v585 = vshrl.u32 %v584, 7
      %v586 = vsub.s32 %v583, %v585
      %v587 = vrot.slane %v578, %v586
      %v589 = vunpack.c.l.s4 1983009808
      %v590 = vunpack.c.0.s8 %v589
      %v591 = vlaneseq
      %v592 = vshrl.u32 %v591, 7
      %v593 = vsub.s32 %v590, %v592
      %v594 = vrot.slane %v580, %v593
      %595 = vrot.lane.b32.xlu0 %v587, 109
      %v596 = vpop.permute.xlu0 %595
      %597 = vrot.lane.b32.xlu0 %v594, 109
      %v598 = vpop.permute.xlu0 %597
      %v599 = vrot.slane %v596, 4
      %v600 = vrot.slane %v598, 4
      %v601 = vsel %vm507, %v599, %v600
      %vm602 = vcmask 891904
      %v603 = vsel %vm602, %v596, %v601
      %v604 = vsel %vm602, %v598, %v600
      %607 = vst [vmem:[#allocation3 + $0x18] sm:$0x33] %v603
      %608 = vst [vmem:[#allocation3 + $0x20] sm:$0x3] %v604
      %v609 = vld [vmem:[#allocation2] sm:$0xff]
      %v611 = vcombine.low %v609, %v609
      %v613 = vunpack.c.l.s4 1983009808
      %v614 = vunpack.c.0.s8 %v613
      %v615 = vlaneseq
      %v616 = vshrl.u32 %v615, 7
      %v617 = vsub.s32 %v614, %v616
      %v618 = vrot.slane %v611, %v617
      %v620 = vunpack.c.l.s4 1983009808
      %v621 = vunpack.c.0.s8 %v620
      %v622 = vlaneseq
      %v623 = vshrl.u32 %v622, 7
      %v624 = vsub.s32 %v621, %v623
      %v625 = vrot.slane %v609, %v624
      %626 = vrot.lane.b32.xlu0 %v618, 108
      %v627 = vpop.permute.xlu0 %626
      %628 = vrot.lane.b32.xlu0 %v625, 108
      %v629 = vpop.permute.xlu0 %628
      %v630 = vrot.slane %v627, 4
      %v631 = vrot.slane %v629, 4
      %v632 = vsel %vm507, %v630, %v631
      %vm633 = vcmask 883712
      %v634 = vsel %vm633, %v627, %v632
      %v635 = vsel %vm633, %v629, %v631
      %638 = vst [vmem:[#allocation3 + $0x18] sm:$0xcc] %v634
      %639 = vst [vmem:[#allocation3 + $0x20] sm:$0xc] %v635
      %v640 = vld [vmem:[#allocation2] sm:$0xff]
      %v642 = vcombine.high %v640, %v640
      %v644 = vunpack.c.l.s4 1983009808
      %v645 = vunpack.c.0.s8 %v644
      %v646 = vlaneseq
      %v647 = vshrl.u32 %v646, 7
      %v648 = vsub.s32 %v645, %v647
      %v649 = vrot.slane %v640, %v648
      %v651 = vunpack.c.l.s4 1983009808
      %v652 = vunpack.c.0.s8 %v651
      %v653 = vlaneseq
      %v654 = vshrl.u32 %v653, 7
      %v655 = vsub.s32 %v652, %v654
      %v656 = vrot.slane %v642, %v655
      %657 = vrot.lane.b32.xlu0 %v649, 92
      %v658 = vpop.permute.xlu0 %657
      %659 = vrot.lane.b32.xlu0 %v656, 92
      %v660 = vpop.permute.xlu0 %659
      %v661 = vrot.slane %v658, 4
      %v662 = vrot.slane %v660, 4
      %v663 = vsel %vm507, %v661, %v662
      %vm664 = vcmask 752640
      %v665 = vsel %vm664, %v658, %v663
      %v666 = vsel %vm664, %v660, %v662
      %669 = vst [vmem:[#allocation3 + $0x24] sm:$0x33] %v665
      %670 = vst [vmem:[#allocation3 + $0x2c] sm:$0x3] %v666
      %v671 = vld [vmem:[#allocation2] sm:$0xff]
      %v673 = vcombine.low %v671, %v671
      %v675 = vunpack.c.l.s4 1983009808
      %v676 = vunpack.c.0.s8 %v675
      %v677 = vlaneseq
      %v678 = vshrl.u32 %v677, 7
      %v679 = vsub.s32 %v676, %v678
      %v680 = vrot.slane %v673, %v679
      %v682 = vunpack.c.l.s4 1983009808
      %v683 = vunpack.c.0.s8 %v682
      %v684 = vlaneseq
      %v685 = vshrl.u32 %v684, 7
      %v686 = vsub.s32 %v683, %v685
      %v687 = vrot.slane %v671, %v686
      %688 = vrot.lane.b32.xlu0 %v680, 91
      %v689 = vpop.permute.xlu0 %688
      %690 = vrot.lane.b32.xlu0 %v687, 91
      %v691 = vpop.permute.xlu0 %690
      %v692 = vrot.slane %v689, 4
      %v693 = vrot.slane %v691, 4
      %v694 = vsel %vm507, %v692, %v693
      %vm695 = vcmask 744448
      %v696 = vsel %vm695, %v689, %v694
      %v697 = vsel %vm695, %v691, %v693
      %700 = vst [vmem:[#allocation3 + $0x24] sm:$0xcc] %v696
      %701 = vst [vmem:[#allocation3 + $0x2c] sm:$0xc] %v697
      %v702 = vld [vmem:[#allocation2] sm:$0xff]
      %v704 = vcombine.high %v702, %v702
      %v706 = vunpack.c.l.s4 1983009808
      %v707 = vunpack.c.0.s8 %v706
      %v708 = vlaneseq
      %v709 = vshrl.u32 %v708, 7
      %v710 = vsub.s32 %v707, %v709
      %v711 = vrot.slane %v702, %v710
      %v713 = vunpack.c.l.s4 1983009808
      %v714 = vunpack.c.0.s8 %v713
      %v715 = vlaneseq
      %v716 = vshrl.u32 %v715, 7
      %v717 = vsub.s32 %v714, %v716
      %v718 = vrot.slane %v704, %v717
      %719 = vrot.lane.b32.xlu0 %v711, 90
      %v720 = vpop.permute.xlu0 %719
      %721 = vrot.lane.b32.xlu0 %v718, 90
      %v722 = vpop.permute.xlu0 %721
      %v723 = vrot.slane %v720, 4
      %v724 = vrot.slane %v722, 4
      %v725 = vsel %vm507, %v723, %v724
      %vm726 = vcmask 736256
      %v727 = vsel %vm726, %v720, %v725
      %v728 = vsel %vm726, %v722, %v724
      %731 = vst [vmem:[#allocation3 + $0x30] sm:$0x33] %v727
      %732 = vst [vmem:[#allocation3 + $0x38] sm:$0x3] %v728
      %v733 = vld [vmem:[%s3] sm:$0xf]
      %v734 = vld [vmem:[%s3 + $0x4] sm:$0xf]
      %v735 = vld [vmem:[#allocation3] sm:$0xff]
      %v736 = vld [vmem:[#allocation3 + $0x8] sm:$0xf]
      %v737 = vld [vmem:[#allocation3 + $0xc] sm:$0xff]
      %v738 = vld [vmem:[#allocation3 + $0x14] sm:$0xf]
      %v739 = vld [vmem:[#allocation3 + $0x18] sm:$0xff]
      %v740 = vld [vmem:[#allocation3 + $0x20] sm:$0xf]
      %v741 = vld [vmem:[#allocation3 + $0x24] sm:$0xff]
      %v742 = vld [vmem:[#allocation3 + $0x2c] sm:$0xf]
      %v743 = vld [vmem:[#allocation3 + $0x30] sm:$0x33]
      %v744 = vld [vmem:[#allocation3 + $0x38] sm:$0x3]
      %v745 = vld [vmem:[%s4] sm:$0xff]
      %v746 = vld [vmem:[%s4 + $0x8] sm:$0xff]
      %748 = vset.pattern.permute.xlu0 0
      %749 = vperm.xlu0 %748, %v745
      %v750 = vpop.permute.xlu0 %749
      %753 = vset.pattern.permute.xlu0 0
      %754 = vperm.xlu0 %753, %v746
      %v755 = vpop.permute.xlu0 %754
      %v759 = vunpack.c.l.b16 %v733
      %v760 = vunpack.c.l.b16 %v734
      %v761 = vpack.c.b16 %v760, %v759
      %v772 = vunpack.c.l.b16 %v735
      %v773 = vunpack.c.h.b16 %v735
      %v774 = vunpack.c.l.b16 %v736
      %v775 = vunpack.c.l.b16 %v737
      %v776 = vunpack.c.h.b16 %v737
      %v777 = vunpack.c.l.b16 %v738
      %v778 = vunpack.c.l.b16 %v739
      %v779 = vunpack.c.h.b16 %v739
      %v780 = vunpack.c.l.b16 %v740
      %v781 = vunpack.c.l.b16 %v741
      %v782 = vunpack.c.h.b16 %v741
      %v783 = vunpack.c.l.b16 %v742
      %v784 = vunpack.c.l.b16 %v743
      %v785 = vunpack.c.h.b16 %v743
      %v786 = vunpack.c.l.b16 %v744
      %v787 = vpack.c.b16 %v775, %v772
      %v788 = vpack.c.b16 %v776, %v773
      %v789 = vpack.c.b16 %v777, %v774
      %v790 = vpack.c.b16 %v781, %v778
      %v791 = vpack.c.b16 %v782, %v779
      %v792 = vpack.c.b16 %v783, %v780
      %v793 = vpack.c.b16 %v784, %v784
      %v794 = vpack.c.b16 %v785, %v785
      %v795 = vpack.c.b16 %v786, %v786
      %vm802 = vcmask 293888
      %v804 = vsel %vm802, %v761, 0
      %v807 = vsel %vm256, %v793, 0
      %v810 = vsel %vm256, %v794, 0
      %v813 = vsel %vm256, %v795, 0
      %815 = vmatprep.subr.bf16.mxu0 0
      %816 = vmatpush1.bf16.msra.mxu0 0
      %817 = vmatprep.subr.bf16.mxu0 0
      %818 = vmatpush1.bf16.msra.mxu0 0
      %819 = vmatprep.subr.bf16.mxu0 0
      %820 = vmatpush1.bf16.msra.mxu0 0
      %821 = vmatprep.subr.bf16.mxu0 0
      %822 = vmatpush1.bf16.msra.mxu0 0
      %823 = vmatprep.subr.bf16.mxu0 0
      %824 = vmatpush1.bf16.msra.mxu0 0
      %825 = vmatprep.subr.bf16.mxu0 %v810
      %826 = vmatpush1.bf16.msra.mxu0 %v807
      %827 = vmatprep.subr.bf16.mxu0 %v791
      %828 = vmatpush1.bf16.msra.mxu0 %v790
      %829 = vmatprep.subr.bf16.mxu0 %v788
      %830 = vmatpush1.bf16.msra.mxu0 %v787
      %831 = vmatprep.subr.bf16.mxu0 0
      %832 = vmatpush2.bf16.msra.mxu0 0
      %833 = vmatprep.subr.bf16.mxu0 0
      %834 = vmatpush2.bf16.msra.mxu0 0
      %835 = vmatprep.subr.bf16.mxu0 0
      %836 = vmatpush2.bf16.msra.mxu0 0
      %837 = vmatprep.subr.bf16.mxu0 0
      %838 = vmatpush2.bf16.msra.mxu0 0
      %839 = vmatprep.subr.bf16.mxu0 0
      %840 = vmatpush2.bf16.msra.mxu0 0
      %841 = vmatprep.subr.bf16.mxu0 0
      %842 = vmatpush2.bf16.msra.mxu0 0
      %843 = vmatprep.subr.bf16.mxu0 0
      %844 = vmatpush2.bf16.msra.mxu0 0
      %845 = vmatprep.subr.bf16.mxu0 0
      %846 = vmatpush2.bf16.msra.mxu0 0
      %847 = vmatprep.mubr.bf16.mxu0 0
      %848 = vmatmul.mubr.bf16.gmra.mxu0 %v804
      %v849 = vpop.f32.mrf.mxu0
      %v850 = vadd.f32 %v750, %v849
      %v851 = vpop.f32.mrf.mxu0
      %v852 = vadd.f32 %v750, %v851
      %v853 = vpop.f32.mrf.mxu0
      %v854 = vadd.f32 %v755, %v853
      %v855 = vpop.f32.mrf.mxu0
      %v856 = vadd.f32 %v755, %v855
      %857 = vdwg.mxu0
      %858 = vmatprep.subr.bf16.mxu0 0
      %859 = vmatpush1.bf16.msra.mxu0 0
      %860 = vmatprep.subr.bf16.mxu0 0
      %861 = vmatpush1.bf16.msra.mxu0 0
      %862 = vmatprep.subr.bf16.mxu0 0
      %863 = vmatpush1.bf16.msra.mxu0 0
      %864 = vmatprep.subr.bf16.mxu0 0
      %865 = vmatpush1.bf16.msra.mxu0 0
      %866 = vmatprep.subr.bf16.mxu0 0
      %867 = vmatpush1.bf16.msra.mxu0 0
      %868 = vmatprep.subr.bf16.mxu0 0
      %869 = vmatpush1.bf16.msra.mxu0 %v813
      %870 = vmatprep.subr.bf16.mxu0 0
      %871 = vmatpush1.bf16.msra.mxu0 %v792
      %872 = vmatprep.subr.bf16.mxu0 0
      %873 = vmatpush1.bf16.msra.mxu0 %v789
      %874 = vmatprep.subr.bf16.mxu0 0
      %875 = vmatpush2.bf16.msra.mxu0 0
      %876 = vmatprep.subr.bf16.mxu0 0
      %877 = vmatpush2.bf16.msra.mxu0 0
      %878 = vmatprep.subr.bf16.mxu0 0
      %879 = vmatpush2.bf16.msra.mxu0 0
      %880 = vmatprep.subr.bf16.mxu0 0
      %881 = vmatpush2.bf16.msra.mxu0 0
      %882 = vmatprep.subr.bf16.mxu0 0
      %883 = vmatpush2.bf16.msra.mxu0 0
      %884 = vmatprep.subr.bf16.mxu0 0
      %885 = vmatpush2.bf16.msra.mxu0 0
      %886 = vmatprep.subr.bf16.mxu0 0
      %887 = vmatpush2.bf16.msra.mxu0 0
      %888 = vmatprep.subr.bf16.mxu0 0
      %889 = vmatpush2.bf16.msra.mxu0 0
      %890 = vmatprep.mubr.bf16.mxu0 0
      %891 = vmatmul.mubr.bf16.gmra.mxu0 %v804
      %v892 = vpop.f32.mrf.mxu0
      %v893 = vadd.f32 %v750, %v892
      %v894 = vpop.f32.mrf.mxu0
      %v895 = vpop.f32.mrf.mxu0
      %v896 = vadd.f32 %v755, %v895
      %v897 = vpop.f32.mrf.mxu0
      %898 = vdwg.mxu0
      %v899 = vmax.f32 %v850, %v854
      %v900 = vmax.f32 %v852, %v856
      %v901 = vmax.f32 %v893, %v896
      %v902 = vpack.c.bf16 %v899, %v899
      %v903 = vpack.c.bf16 %v900, %v900
      %v904 = vpack.c.bf16 %v901, %v901
      %v908 = vunpack.c.l.b16 %v902
      %v909 = vunpack.c.l.b16 %v903
      %v910 = vunpack.c.l.b16 %v904
      %v911 = vpack.c.b16 %v909, %v908
      %v912 = vpack.c.b16 %v910, %v910
      %915 = vst [vmem:[%s224] sm:$0xff] %v911
      %916 = vst [vmem:[%s224 + $0x8] sm:$0xf] %v912
      %p917 = scmp.lt.s32.totalorder %s16, 1
      %s918 = scalar_select %p917, %s16, 1
      %s919 = smul.addr %s918, 3
      %s920 = smul.addr %s919, 4
      %s921 = scalar_lea.vmem %s5, %s920
      // Predicated region
      $region41: #{group_forward.1} parent=39 // pred_check
        %p922 = pneg %p144
      $region42: #{group_forward.1} parent=39 // pred_check_branch
        %924 = sbr.rel (%p922) target = $region44
      $region43: #{group_forward.1} parent=39 // pred_region
        _
      $region44: #{group_forward.1} parent=39 // pred_fallthru
        _
    $region40: #{group_forward.1} parent=5 // pred_fallthru
      _
    %p925 = scmp.le.s32.totalorder 2, %s11
    // Predicated region
    $region45: #{group_forward.1} parent=5 // pred_check
      %p926 = pneg %p925
    $region46: #{group_forward.1} parent=5 // pred_check_branch
      %928 = sbr.rel (%p926) target = $region48
    $region47: #{group_forward.1} parent=5 // pred_region
      %s929 = ssub.s32 %s11, 2
      // Predicated region
      $region49: #{group_forward.1} parent=47 // pred_check
        %p930 = pneg %p150
      $region50: #{group_forward.1} parent=47 // pred_check_branch
        %932 = sbr.rel (%p930) target = $region52
      $region51: #{group_forward.1} parent=47 // pred_region
        %p933 = scmp.lt.s32.totalorder %s17, 1
        %s934 = scalar_select %p933, %s17, 1
        %s935 = smul.addr %s934, 3
        %s936 = smul.addr %s935, 4
        %s937 = scalar_lea.vmem %s5, %s936
      $region52: #{group_forward.1} parent=47 // pred_fallthru
        _
    $region48: #{group_forward.1} parent=5 // pred_fallthru
      _
  $region6: #{group_forward.1} parent=0 // loop_footer
    %s15 = sadd.s32 1, %s11
  $region7: #{group_forward.1} parent=0 // loop_footer_branch
    %10 = sbr.rel target = $region3
  $region8: #{group_forward.1} parent=0 // loop_exit
    _

</llo_original>
